<compile_context>
chip_gen: v7x
topology: tpu7x:2x2x1
jax: 0.10.0
libtpu: 0.0.40
codegen_flags: <defaults>
</compile_context>

<pallas_src>
import jax
import jax.numpy as jnp
from jax.experimental import pallas as pl
from jax.experimental.pallas import tpu as pltpu


NEG_SLOPE = 0.01  # torch.nn.LeakyReLU default


def _round_up(x, m):
    return ((x + m - 1) // m) * m


def _leaky_relu(x):
    return jnp.where(x >= 0, x, NEG_SLOPE * x)


def multi_stick_kernel(x_ref, wf_ref, b1_ref, w2_ref, b2_ref, o_ref):
    """Two fused MXU matmuls + per-batch (PE-folded) bias + LeakyReLU per row tile.

    x_ref : (tile_n, F)   f32   input rows (cast to bf16 here, on the VPU)
    wf_ref: (F, Dp)       bf16  fused weight  We @ W1
    b1_ref: (1, Dp)       f32   fused bias    be@W1 + b1 + pe[batch]@W1
    w2_ref: (Dp, Dp)      bf16  proj-2 weight
    b2_ref: (1, Dp)       f32   proj-2 bias
    o_ref : (tile_n, Dp)  out dtype
    """
    x = x_ref[...].astype(wf_ref.dtype)                       # f32 -> bf16 in-kernel
    h1 = jnp.dot(x, wf_ref[...], preferred_element_type=jnp.float32)
    h1 = _leaky_relu(h1 + b1_ref[...])
    h2 = jnp.dot(h1.astype(w2_ref.dtype), w2_ref[...],
                 preferred_element_type=jnp.float32)
    h2 = _leaky_relu(h2 + b2_ref[...])
    o_ref[...] = h2.astype(o_ref.dtype)


def make_positional_encoding(d_model, max_len=1000):
    """PositionalEncoding.pe with shape (max_len, 1, d_model) (matches torch code)."""
    position = jnp.arange(0, max_len, dtype=jnp.float32)[:, None]
    div_term = jnp.exp(jnp.arange(0, d_model, 2, dtype=jnp.float32)
                       * (-jnp.log(10000.0) / d_model))
    angles = position * div_term                       # (max_len, d_model//2)
    pe = jnp.zeros((max_len, d_model), dtype=jnp.float32)
    pe = pe.at[:, 0::2].set(jnp.sin(angles))
    pe = pe.at[:, 1::2].set(jnp.cos(angles))
    return pe[:, None, :]                              # (max_len, 1, d_model)


def _vmem_policy():
    """Generation-aware (vmem_limit_bytes, tile budget) in bytes."""
    try:
        cap = int(pltpu.get_tpu_info().vmem_capacity_bytes)   # per-TensorCore
    except Exception:                                         # no query available
        cap = 64 * 1024 * 1024                                # v7x-safe fallback
    vmem_limit = min((cap * 3) // 4, 96 * 1024 * 1024)        # headroom under physical
    budget = max(vmem_limit - (8 << 20), 16 << 20)
    return vmem_limit, budget


def multi_stick_encoder(x, params, *, tile_m=1024, out_dtype=jnp.float32):
    """x: (b, n, l, p, c) float32 -> (b, n, d_model) out_dtype."""
    b, n, l, p, c = x.shape
    F = l * p * c
    D = params["w1"].shape[0]
    f32, bf16 = jnp.float32, jnp.bfloat16

    we = params["w_enc"].astype(f32)          # (F, D)
    be = params["b_enc"].astype(f32)          # (D,)
    w1 = params["w1"].astype(f32)             # (D, D)
    b1 = params["b1"].astype(f32)
    w2 = params["w2"].astype(f32)
    b2 = params["b2"].astype(f32)
    pe = params["pe"][:b, 0, :].astype(f32)   # (b, D)  (broadcast over n)

    # ---- algebraic fusion (no nonlinearity between encoder Linear, PE add, proj-1):
    #        (x@We + be + pe[bi]) @ W1 + b1  ==  x @ (We@W1) + (be@W1 + b1 + pe[bi]@W1)
    wf = we @ w1                                            # (F, D) f32
    bias1 = (be @ w1 + b1)[None, :] + pe @ w1               # (b, D) f32, per batch

    # ---- lane-dense padding of the output/N dim only (weights are tiny; padded
    #      lanes come out exactly zero, so slicing them off later is benign).
    Dp = _round_up(D, 128)

    def pad2(a, rows, cols, dtype):
        if a.shape == (rows, cols) and a.dtype == dtype:
            return a
        return jnp.zeros((rows, cols), dtype).at[:a.shape[0], :a.shape[1]].set(
            a.astype(dtype))

    wf_p = pad2(wf, F, Dp, bf16)                      # (F, Dp)
    w2_p = pad2(w2, Dp, Dp, bf16)                     # (Dp, Dp)
    b1_p = pad2(bias1, b, Dp, f32).reshape(b, 1, Dp)  # (b, 1, Dp)
    b2_p = pad2(b2[None, :], 1, Dp, f32)              # (1, Dp)

    # ---- row tiling within each batch element: 2-D grid (batch, row tile).
    vmem_limit, budget = _vmem_policy()
    out_bytes = jnp.dtype(out_dtype).itemsize
    # Pallas double-buffers every pipelined block — count 2x for all of them,
    # including the constant-index "resident" weights/biases.
    w_bytes = 2 * (F * Dp * 2 + Dp * Dp * 2 + Dp * 4 + Dp * 4)
    per_row = 2 * F * 4 + 2 * Dp * out_bytes + 2 * Dp * 4    # x + out blocks + f32 temps
    max_rows = max(int((budget - w_bytes) // per_row), 8)
    if n <= min(tile_m, max_rows):
        tile_n = n                                   # one full row-block per batch
    else:
        tile_n = max(8, (min(tile_m, max_rows) // 8) * 8)
    nt = pl.cdiv(n, tile_n)

    x3 = x.reshape(b, n, F)      # metadata-only reshape; fed in native f32 (no HBM copy)
    # TODO(synk): if F*Dp weights ever outgrow the VMEM budget (very long l*p*c),
    #             add a K grid axis with an f32 accumulator instead of shrinking tile_n.

    out = pl.pallas_call(
        multi_stick_kernel,
        out_shape=jax.ShapeDtypeStruct((b, n, Dp), out_dtype),
        grid=(b, nt),
        in_specs=[
            pl.BlockSpec((None, tile_n, F), lambda bi, ti: (bi, ti, 0)),   # x row tiles
            pl.BlockSpec((F, Dp), lambda bi, ti: (0, 0)),                  # fused W (resident)
            pl.BlockSpec((None, 1, Dp), lambda bi, ti: (bi, 0, 0)),        # per-batch fused bias (PE folded)
            pl.BlockSpec((Dp, Dp), lambda bi, ti: (0, 0)),                 # proj-2 W (resident)
            pl.BlockSpec((1, Dp), lambda bi, ti: (0, 0)),                  # proj-2 bias (resident)
        ],
        out_specs=pl.BlockSpec((None, tile_n, Dp), lambda bi, ti: (bi, ti, 0)),
        compiler_params=pltpu.CompilerParams(
            dimension_semantics=("parallel", "parallel"),   # megacore-shardable
            vmem_limit_bytes=vmem_limit,
        ),
    )(x3, wf_p, b1_p, w2_p, b2_p)

    if Dp != D:
        out = out[:, :, :D]      # only pays a copy when d_model % 128 != 0
    return out


def reference(x, params):
    """Pure-JAX f32 reference of the module's forward pass (unfused)."""
    b, n, l, p, c = x.shape
    d_model = params["w1"].shape[0]
    x_flat = x.reshape(b * n, l * p * c).astype(jnp.float32)
    enc = x_flat @ params["w_enc"] + params["b_enc"]           # (b*n, d)
    x3 = enc.reshape(b, n, d_model)
    x4 = x3 + params["pe"][:b]                                 # (b,1,d) broadcast over n
    h = x4.reshape(b * n, d_model)
    h1 = h @ params["w1"] + params["b1"]
    h1 = jnp.where(h1 >= 0, h1, NEG_SLOPE * h1)
    h2 = h1 @ params["w2"] + params["b2"]
    h2 = jnp.where(h2 >= 0, h2, NEG_SLOPE * h2)
    return h2.reshape(b, n, d_model)


if __name__ == "__main__":
    # Small shapes consistent with the forward pass: x is (b, n, l, p, c).
    b, n, l, p, c = 2, 4, 8, 6, 3
    d_model = 32
    F = l * p * c

    key = jax.random.PRNGKey(0)
    kx, ke, k1, k2, kb0, kb1, kb2 = jax.random.split(key, 7)

    x = jax.random.normal(kx, (b, n, l, p, c), dtype=jnp.float32)

    params = {
        "w_enc": 0.05 * jax.random.normal(ke, (F, d_model), dtype=jnp.float32),
        "b_enc": 0.05 * jax.random.normal(kb0, (d_model,), dtype=jnp.float32),
        "w1":    0.05 * jax.random.normal(k1, (d_model, d_model), dtype=jnp.float32),
        "b1":    0.05 * jax.random.normal(kb1, (d_model,), dtype=jnp.float32),
        "w2":    0.05 * jax.random.normal(k2, (d_model, d_model), dtype=jnp.float32),
        "b2":    0.05 * jax.random.normal(kb2, (d_model,), dtype=jnp.float32),
        "pe":    make_positional_encoding(d_model),            # (max_len, 1, d_model)
    }

    y = multi_stick_encoder(x, params)
    y = jax.block_until_ready(y)

    y_ref = reference(x, params)
    assert y.shape == (b, n, d_model)
    # bf16 matmul operands -> compare against f32 reference with bf16-level tolerance.
    assert jnp.allclose(y, y_ref, atol=2e-2, rtol=2e-2), (
        "mismatch vs pure-JAX reference; max abs diff = "
        f"{float(jnp.max(jnp.abs(y - y_ref)))}")

    print("KERNEL_OK")
</pallas_src>

<mosaic_0001>
module attributes {stable_mosaic.version = 11 : i64} {
  func.func @multi_stick_kernel(%arg0: i32, %arg1: i32, %arg2: memref<1x4x144xf32, #tpu.memory_space<vmem>>, %arg3: memref<144x128xbf16, #tpu.memory_space<vmem>>, %arg4: memref<1x1x128xf32, #tpu.memory_space<vmem>>, %arg5: memref<128x128xbf16, #tpu.memory_space<vmem>>, %arg6: memref<1x128xf32, #tpu.memory_space<vmem>>, %arg7: memref<1x4x128xf32, #tpu.memory_space<vmem>>) attributes {dimension_semantics = [#tpu.dimension_semantics<parallel>, #tpu.dimension_semantics<parallel>], iteration_bounds = array<i64: 2, 1>, scalar_prefetch = 0 : i64, scratch_operands = 0 : i64, tpu.core_type = #tpu.core_type<tc>, window_params = [{transform_indices = @transform_0, window_bounds = array<i64: 1, 4, 144>}, {pipeline_mode = #tpu.pipeline_mode<synchronous>, transform_indices = @transform_1, window_bounds = array<i64: 144, 128>}, {transform_indices = @transform_2, window_bounds = array<i64: 1, 1, 128>}, {pipeline_mode = #tpu.pipeline_mode<synchronous>, transform_indices = @transform_3, window_bounds = array<i64: 128, 128>}, {pipeline_mode = #tpu.pipeline_mode<synchronous>, transform_indices = @transform_4, window_bounds = array<i64: 1, 128>}, {transform_indices = @transform_5, window_bounds = array<i64: 1, 4, 128>}]} {
    %c0 = arith.constant 0 : index
    %c0_0 = arith.constant 0 : index
    %c0_1 = arith.constant 0 : index
    %0 = vector.load %arg2[%c0, %c0_0, %c0_1] : memref<1x4x144xf32, #tpu.memory_space<vmem>>, vector<1x4x144xf32>
    %1 = vector.shape_cast %0 : vector<1x4x144xf32> to vector<4x144xf32>
    %2 = arith.truncf %1 : vector<4x144xf32> to vector<4x144xbf16>
    %c0_2 = arith.constant 0 : index
    %c0_3 = arith.constant 0 : index
    %3 = vector.load %arg3[%c0_2, %c0_3] : memref<144x128xbf16, #tpu.memory_space<vmem>>, vector<144x128xbf16>
    %cst = arith.constant dense<0.000000e+00> : vector<4x128xf32>
    %4 = tpu.matmul %2, %3, %cst {dimension_numbers = #tpu.dot_dimension_numbers<[1], [0], [0], [1], [0, 0, 1, 1], [], []>} : vector<4x144xbf16>, vector<144x128xbf16>, vector<4x128xf32> -> vector<4x128xf32>
    %c0_4 = arith.constant 0 : index
    %c0_5 = arith.constant 0 : index
    %c0_6 = arith.constant 0 : index
    %5 = vector.load %arg4[%c0_4, %c0_5, %c0_6] : memref<1x1x128xf32, #tpu.memory_space<vmem>>, vector<1x1x128xf32>
    %6 = vector.shape_cast %5 : vector<1x1x128xf32> to vector<1x128xf32>
    %7 = vector.broadcast %6 : vector<1x128xf32> to vector<4x128xf32>
    %8 = arith.addf %4, %7 : vector<4x128xf32>
    %cst_7 = arith.constant 0.000000e+00 : f32
    %9 = vector.broadcast %cst_7 : f32 to vector<4x128xf32>
    %10 = arith.cmpf oge, %8, %9 : vector<4x128xf32>
    %cst_8 = arith.constant 0.00999999977 : f32
    %11 = vector.broadcast %cst_8 : f32 to vector<4x128xf32>
    %12 = arith.mulf %11, %8 : vector<4x128xf32>
    %13 = arith.select %10, %8, %12 : vector<4x128xi1>, vector<4x128xf32>
    %14 = arith.truncf %13 : vector<4x128xf32> to vector<4x128xbf16>
    %c0_9 = arith.constant 0 : index
    %c0_10 = arith.constant 0 : index
    %15 = vector.load %arg5[%c0_9, %c0_10] : memref<128x128xbf16, #tpu.memory_space<vmem>>, vector<128x128xbf16>
    %cst_11 = arith.constant dense<0.000000e+00> : vector<4x128xf32>
    %16 = tpu.matmul %14, %15, %cst_11 {dimension_numbers = #tpu.dot_dimension_numbers<[1], [0], [0], [1], [0, 0, 1, 1], [], []>} : vector<4x128xbf16>, vector<128x128xbf16>, vector<4x128xf32> -> vector<4x128xf32>
    %c0_12 = arith.constant 0 : index
    %c0_13 = arith.constant 0 : index
    %17 = vector.load %arg6[%c0_12, %c0_13] : memref<1x128xf32, #tpu.memory_space<vmem>>, vector<1x128xf32>
    %18 = vector.broadcast %17 : vector<1x128xf32> to vector<4x128xf32>
    %19 = arith.addf %16, %18 : vector<4x128xf32>
    %cst_14 = arith.constant 0.000000e+00 : f32
    %20 = vector.broadcast %cst_14 : f32 to vector<4x128xf32>
    %21 = arith.cmpf oge, %19, %20 : vector<4x128xf32>
    %cst_15 = arith.constant 0.00999999977 : f32
    %22 = vector.broadcast %cst_15 : f32 to vector<4x128xf32>
    %23 = arith.mulf %22, %19 : vector<4x128xf32>
    %24 = arith.select %21, %19, %23 : vector<4x128xi1>, vector<4x128xf32>
    %c0_16 = arith.constant 0 : index
    %c0_17 = arith.constant 0 : index
    %c0_18 = arith.constant 0 : index
    %25 = vector.load %arg7[%c0_16, %c0_17, %c0_18] : memref<1x4x128xf32, #tpu.memory_space<vmem>>, vector<1x4x128xf32>
    %26 = vector.shape_cast %25 : vector<1x4x128xf32> to vector<4x128xf32>
    %27 = vector.shape_cast %24 : vector<4x128xf32> to vector<1x4x128xf32>
    tpu.vector_store %arg7[%c0_16, %c0_17, %c0_18], %27 {strides = array<i32>} : memref<1x4x128xf32, #tpu.memory_space<vmem>>, vector<1x4x128xf32>,
    return
  }
  func.func @transform_0(%arg0: i32, %arg1: i32) -> (i32, i32, i32) {
    %c0_i32 = arith.constant 0 : i32
    %c0_i32_0 = arith.constant 0 : i32
    return %arg0, %arg1, %c0_i32 : i32, i32, i32
  }
  func.func @transform_1(%arg0: i32, %arg1: i32) -> (i32, i32) {
    %c0_i32 = arith.constant 0 : i32
    %c0_i32_0 = arith.constant 0 : i32
    %c0_i32_1 = arith.constant 0 : i32
    return %c0_i32, %c0_i32_0 : i32, i32
  }
  func.func @transform_2(%arg0: i32, %arg1: i32) -> (i32, i32, i32) {
    %c0_i32 = arith.constant 0 : i32
    %c0_i32_0 = arith.constant 0 : i32
    %c0_i32_1 = arith.constant 0 : i32
    return %arg0, %c0_i32, %c0_i32_0 : i32, i32, i32
  }
  func.func @transform_3(%arg0: i32, %arg1: i32) -> (i32, i32) {
    %c0_i32 = arith.constant 0 : i32
    %c0_i32_0 = arith.constant 0 : i32
    %c0_i32_1 = arith.constant 0 : i32
    return %c0_i32, %c0_i32_0 : i32, i32
  }
  func.func @transform_4(%arg0: i32, %arg1: i32) -> (i32, i32) {
    %c0_i32 = arith.constant 0 : i32
    %c0_i32_0 = arith.constant 0 : i32
    %c0_i32_1 = arith.constant 0 : i32
    return %c0_i32, %c0_i32_0 : i32, i32
  }
  func.func @transform_5(%arg0: i32, %arg1: i32) -> (i32, i32, i32) {
    %c0_i32 = arith.constant 0 : i32
    %c0_i32_0 = arith.constant 0 : i32
    return %arg0, %arg1, %c0_i32 : i32, i32, i32
  }
}

</mosaic_0001>

<llo_original>
// kernel: tpu_custom_call.1
$region0: #{tpu_custom_call.1}
  #allocation0 [shape = 'u32[]', space=smem, size = 0x4, offset = 0x4, fixed_abs, tag = 'smem constant byte address 0x4 - core index']
  #allocation1 [shape = 'u32[144,128]{1,0:T(1,128)}', space=vmem, size = 0x12000, scoped, tag = 'internal scratch']
  %s0 = inlined_call_operand.hbm [shape: f32[2,4,144], index: 0, kind: input, shape index: {}]
  %s1 = inlined_call_operand.hbm [shape: bf16[144,128], index: 1, kind: input, shape index: {}]
  %s2 = inlined_call_operand.vmem [shape: f32[2,1,128], index: 2, kind: input, shape index: {}]
  %s3 = inlined_call_operand.hbm [shape: bf16[128,128], index: 3, kind: input, shape index: {}]
  %s4 = inlined_call_operand.vmem [shape: f32[1,128], index: 4, kind: input, shape index: {}]
  %s5 = inlined_call_operand.hbm [shape: f32[2,4,128], index: 5, kind: output, shape index: {}]
  %s6 = sld [smem:[#allocation0]]
  $region65: #{tpu_custom_call.1} parent=0
    _
  %s8 = ssub.s32 1, %s6
  %s9 = scalar_select 0, %s8, %s6
  $region1: #{tpu_custom_call.1} parent=0
    #allocation2 [shape = 'u8[8192]{0}', space=vmem, size = 0x2000, scoped, tag = 'input window, operand 0']
    #allocation3 [shape = 's32[2]{0}', space=sflag, size = 0x8, scoped, tag = 'scoped memory for tpu_custom_call.1']
    #allocation4 [shape = 's32[2]{0}', space=sflag, size = 0x8, scoped, tag = 'scoped memory for tpu_custom_call.1']
    #allocation5 [shape = 'u8[36864]{0}', space=vmem, size = 0x9000, scoped, tag = 'input window, operand 1, single buffered']
    #allocation6 [shape = 's32[1]{0}', space=sflag, size = 0x4, scoped, tag = 'scoped memory for tpu_custom_call.1']
    #allocation7 [shape = 'u8[32768]{0}', space=vmem, size = 0x8000, scoped, tag = 'input window, operand 3, single buffered']
    #allocation8 [shape = 'u8[4096]{0}', space=vmem, size = 0x1000, scoped, tag = 'output window, operand 0']
    %10 = vsyncpa [#allocation3], 0
    %s11 = scalar_lea.sflag [#allocation3], 1
    %12 = vsyncpa %s11, 0
    %13 = vsyncpa [#allocation6], 0
    %14 = vsyncpa [#allocation4], 0
    %s15 = scalar_lea.sflag [#allocation4], 1
    %16 = vsyncpa %s15, 0
    loop: start=0, step=1, limit=4
    $region2: #{tpu_custom_call.1} parent=1 // loop_pre_header
      _
    $region3: #{tpu_custom_call.1} parent=1 // loop_header
      %s18 = sphi 0, %s22
      %p19 = scmp.ge.s32.totalorder %s18, 4
      %s25 = sphi 0, %s37
      %s26 = sphi 0, %s33
      %s27 = sphi 0, %s25
      %s28 = sphi 0, %s26
      %s29 = sphi 0, %s27
      %s30 = sphi 0, %s28
      %s42 = sphi 0, %s44
      %s45 = sphi 0, %s42
      %s46 = sphi 0, %s45
      %s62 = sphi 0, %s46
      %s66 = sphi 0, %s66
      %s68 = sphi 0, %s66
      %s69 = sphi 0, %s68
      %s83 = sphi 0, %s69
      %s89 = sphi 0, %s91
      %s92 = sphi 0, %s89
      %s93 = sphi 0, %s92
      %s109 = sphi 0, %s93
      %s113 = sphi 0, %s113
      %s115 = sphi 0, %s113
      %s116 = sphi 0, %s115
      %s130 = sphi 0, %s116
      %s134 = sphi 0, %s134
      %s136 = sphi 0, %s134
      %s137 = sphi 0, %s136
      %s151 = sphi 0, %s137
      %s159 = sphi 0, %s161
      %s162 = sphi 0, %s159
      %s163 = sphi 0, %s162
      %s179 = sphi 0, %s163
    $region4: #{tpu_custom_call.1} parent=1 // loop_header_branch
      %21 = sbr.rel (%p19) target = $region8
    $region5: #{tpu_custom_call.1} parent=1 // loop_body
      %s23 = ssub.s32 %s18, 1
      %s24 = ssub.s32 %s18, 2
      %s31 = sadd.s32 1, %s26
      %p32 = scmp.ge.s32.totalorder %s31, 1
      %s33 = scalar_select %p32, 0, %s31
      %s34 = sadd.s32 1, %s25
      %s35 = scalar_select %p32, %s34, %s25
      %p36 = scmp.ge.s32.totalorder %s35, 2
      %s37 = scalar_select %p36, 0, %s35
      %s38 = ssub.s32 %s25, %s37
      %s39 = ssub.s32 %s26, %s33
      %s40 = sor.u32 %s38, %s39
      %p41 = scmp.eq.s32.totalorder %s40, 0
      %s43 = sadd.s32 %s42, 1
      %s44 = scalar_select %p41, %s42, %s43
      %p47 = pneg %p41
      %p48 = scmp.eq.s32.totalorder %s18, 1
      %p49 = por %p47, %p48
      %p50 = scmp.ne.s32.totalorder %s42, %s45
      %p51 = scmp.eq.s32.totalorder %s18, 0
      %p52 = por %p50, %p51
      %p53 = scmp.ne.s32.totalorder %s42, %s45
      %p54 = scmp.eq.s32.totalorder %s23, 1
      %p55 = por %p53, %p54
      %p56 = scmp.ne.s32.totalorder %s45, %s46
      %p57 = scmp.eq.s32.totalorder %s23, 0
      %p58 = por %p56, %p57
      %p59 = scmp.ne.s32.totalorder %s45, %s46
      %p60 = scmp.eq.s32.totalorder %s24, 1
      %p61 = por %p59, %p60
      %p63 = scmp.ne.s32.totalorder %s46, %s62
      %p64 = scmp.eq.s32.totalorder %s24, 0
      %p65 = por %p63, %p64
      %s67 = sadd.s32 %s66, 1
      %p70 = scmp.eq.s32.totalorder %s18, 1
      %p71 = scmp.ne.s32.totalorder %s66, %s68
      %p72 = scmp.eq.s32.totalorder %s18, 0
      %p73 = por %p71, %p72
      %p74 = scmp.ne.s32.totalorder %s66, %s68
      %p75 = scmp.eq.s32.totalorder %s23, 1
      %p76 = por %p74, %p75
      %p77 = scmp.ne.s32.totalorder %s68, %s69
      %p78 = scmp.eq.s32.totalorder %s23, 0
      %p79 = por %p77, %p78
      %p80 = scmp.ne.s32.totalorder %s68, %s69
      %p81 = scmp.eq.s32.totalorder %s24, 1
      %p82 = por %p80, %p81
      %p84 = scmp.ne.s32.totalorder %s69, %s83
      %p85 = scmp.eq.s32.totalorder %s24, 0
      %p86 = por %p84, %p85
      %s87 = ssub.s32 %s25, %s37
      %p88 = scmp.eq.s32.totalorder %s87, 0
      %s90 = sadd.s32 %s89, 1
      %s91 = scalar_select %p88, %s89, %s90
      %p94 = pneg %p88
      %p95 = scmp.eq.s32.totalorder %s18, 1
      %p96 = por %p94, %p95
      %p97 = scmp.ne.s32.totalorder %s89, %s92
      %p98 = scmp.eq.s32.totalorder %s18, 0
      %p99 = por %p97, %p98
      %p100 = scmp.ne.s32.totalorder %s89, %s92
      %p101 = scmp.eq.s32.totalorder %s23, 1
      %p102 = por %p100, %p101
      %p103 = scmp.ne.s32.totalorder %s92, %s93
      %p104 = scmp.eq.s32.totalorder %s23, 0
      %p105 = por %p103, %p104
      %p106 = scmp.ne.s32.totalorder %s92, %s93
      %p107 = scmp.eq.s32.totalorder %s24, 1
      %p108 = por %p106, %p107
      %p110 = scmp.ne.s32.totalorder %s93, %s109
      %p111 = scmp.eq.s32.totalorder %s24, 0
      %p112 = por %p110, %p111
      %s114 = sadd.s32 %s113, 1
      %p117 = scmp.eq.s32.totalorder %s18, 1
      %p118 = scmp.ne.s32.totalorder %s113, %s115
      %p119 = scmp.eq.s32.totalorder %s18, 0
      %p120 = por %p118, %p119
      %p121 = scmp.ne.s32.totalorder %s113, %s115
      %p122 = scmp.eq.s32.totalorder %s23, 1
      %p123 = por %p121, %p122
      %p124 = scmp.ne.s32.totalorder %s115, %s116
      %p125 = scmp.eq.s32.totalorder %s23, 0
      %p126 = por %p124, %p125
      %p127 = scmp.ne.s32.totalorder %s115, %s116
      %p128 = scmp.eq.s32.totalorder %s24, 1
      %p129 = por %p127, %p128
      %p131 = scmp.ne.s32.totalorder %s116, %s130
      %p132 = scmp.eq.s32.totalorder %s24, 0
      %p133 = por %p131, %p132
      %s135 = sadd.s32 %s134, 1
      %p138 = scmp.eq.s32.totalorder %s18, 1
      %p139 = scmp.ne.s32.totalorder %s134, %s136
      %p140 = scmp.eq.s32.totalorder %s18, 0
      %p141 = por %p139, %p140
      %p142 = scmp.ne.s32.totalorder %s134, %s136
      %p143 = scmp.eq.s32.totalorder %s23, 1
      %p144 = por %p142, %p143
      %p145 = scmp.ne.s32.totalorder %s136, %s137
      %p146 = scmp.eq.s32.totalorder %s23, 0
      %p147 = por %p145, %p146
      %p148 = scmp.ne.s32.totalorder %s136, %s137
      %p149 = scmp.eq.s32.totalorder %s24, 1
      %p150 = por %p148, %p149
      %p152 = scmp.ne.s32.totalorder %s137, %s151
      %p153 = scmp.eq.s32.totalorder %s24, 0
      %p154 = por %p152, %p153
      %s155 = ssub.s32 %s25, %s37
      %s156 = ssub.s32 %s26, %s33
      %s157 = sor.u32 %s155, %s156
      %p158 = scmp.eq.s32.totalorder %s157, 0
      %s160 = sadd.s32 %s159, 1
      %s161 = scalar_select %p158, %s159, %s160
      %p164 = pneg %p158
      %p165 = scmp.eq.s32.totalorder %s18, 1
      %p166 = por %p164, %p165
      %p167 = scmp.ne.s32.totalorder %s159, %s162
      %p168 = scmp.eq.s32.totalorder %s18, 0
      %p169 = por %p167, %p168
      %p170 = scmp.ne.s32.totalorder %s159, %s162
      %p171 = scmp.eq.s32.totalorder %s23, 1
      %p172 = por %p170, %p171
      %p173 = scmp.ne.s32.totalorder %s162, %s163
      %p174 = scmp.eq.s32.totalorder %s23, 0
      %p175 = por %p173, %p174
      %p176 = scmp.ne.s32.totalorder %s162, %s163
      %p177 = scmp.eq.s32.totalorder %s24, 1
      %p178 = por %p176, %p177
      %p180 = scmp.ne.s32.totalorder %s163, %s179
      %p181 = scmp.eq.s32.totalorder %s24, 0
      %p182 = por %p180, %p181
      %p183 = scmp.le.s32.totalorder 1, %s18
      %p184 = scmp.lt.s32.totalorder %s18, 3
      %p185 = pnand %p183, %p184
      %p186 = pneg %p185
      // Predicated region
      $region9: #{tpu_custom_call.1} parent=5 // pred_check
        _
      $region10: #{tpu_custom_call.1} parent=5 // pred_check_branch
        %188 = sbr.rel (%p185) target = $region12
      $region11: #{tpu_custom_call.1} parent=5 // pred_region
        %s189 = ssub.s32 %s18, 1
        // Predicated region
        $region13: #{tpu_custom_call.1} parent=11 // pred_check
          %p190 = pneg %p79
        $region14: #{tpu_custom_call.1} parent=11 // pred_check_branch
          %192 = sbr.rel (%p190) target = $region16
        $region15: #{tpu_custom_call.1} parent=11 // pred_region
          %s194 = ssub.s32 1152, 1152
          %195 = vsyncadd [#allocation6], %s194
          %s196 = sshll.u32 [#allocation5], 4
          %s197 = int_to_ptr.vmem [resolvable:$true] %s196
          %202 = dma.hbm_to_vmem [thread:$0]  %s1, 1152, %s197, [#allocation6], 64, 64, 4
        $region16: #{tpu_custom_call.1} parent=11 // pred_fallthru
          _
        // Predicated region
        $region17: #{tpu_custom_call.1} parent=11 // pred_check
          %p203 = pneg %p126
        $region18: #{tpu_custom_call.1} parent=11 // pred_check_branch
          %205 = sbr.rel (%p203) target = $region20
        $region19: #{tpu_custom_call.1} parent=11 // pred_region
          %s207 = ssub.s32 1024, 1024
          %208 = vsyncadd [#allocation6], %s207
          %s209 = sshll.u32 [#allocation7], 4
          %s210 = int_to_ptr.vmem [resolvable:$true] %s209
          %215 = dma.hbm_to_vmem [thread:$0]  %s3, 1024, %s210, [#allocation6], 64, 64, 4
        $region20: #{tpu_custom_call.1} parent=11 // pred_fallthru
          _
        // Predicated region
        $region21: #{tpu_custom_call.1} parent=11 // pred_check
          %p216 = pneg %p147
        $region22: #{tpu_custom_call.1} parent=11 // pred_check_branch
          %218 = sbr.rel (%p216) target = $region24
        $region23: #{tpu_custom_call.1} parent=11 // pred_region
          _
        $region24: #{tpu_custom_call.1} parent=11 // pred_fallthru
          _
      $region12: #{tpu_custom_call.1} parent=5 // pred_fallthru
        _
      %p219 = scmp.lt.s32.totalorder %s18, 2
      // Predicated region
      $region25: #{tpu_custom_call.1} parent=5 // pred_check
        %p220 = pneg %p219
      $region26: #{tpu_custom_call.1} parent=5 // pred_check_branch
        %222 = sbr.rel (%p220) target = $region28
      $region27: #{tpu_custom_call.1} parent=5 // pred_region
        // Predicated region
        $region29: #{tpu_custom_call.1} parent=27 // pred_check
          %p223 = pneg %p52
        $region30: #{tpu_custom_call.1} parent=27 // pred_check_branch
          %225 = sbr.rel (%p223) target = $region32
        $region31: #{tpu_custom_call.1} parent=27 // pred_region
          %s226 = sand.u32 %s42, 1
          %s227 = scalar_lea.sflag [#allocation3], %s226
          %s228 = sand.u32 %s42, 1
          %s229 = smul.addr %s228, 8
          %s230 = scalar_lea.vmem [#allocation2], %s229
          %s232 = ssub.s32 128, 128
          %233 = vsyncadd %s227, %s232
          %s234 = smul.addr %s26, 2
          %s235 = smul.addr %s25, 2
          %s236 = sadd.s32 %s234, %s235
          %s237 = smul.addr %s236, 64
          %s238 = scalar_lea.hbm %s0, %s237
          %s240 = sshll.u32 %s230, 4
          %s241 = int_to_ptr.vmem [resolvable:$true] %s240
          %243 = dma.hbm_to_vmem [thread:$0]  %s238, 128, %s241, %s227
        $region32: #{tpu_custom_call.1} parent=27 // pred_fallthru
          _
        // Predicated region
        $region33: #{tpu_custom_call.1} parent=27 // pred_check
          %p244 = pneg %p99
        $region34: #{tpu_custom_call.1} parent=27 // pred_check_branch
          %246 = sbr.rel (%p244) target = $region36
        $region35: #{tpu_custom_call.1} parent=27 // pred_region
          %p247 = scmp.lt.s32.totalorder %s25, 1
          %s248 = scalar_select %p247, %s25, 1
          %s249 = scalar_lea.vmem %s2, %s248
        $region36: #{tpu_custom_call.1} parent=27 // pred_fallthru
          _
      $region28: #{tpu_custom_call.1} parent=5 // pred_fallthru
        _
      %p250 = scmp.le.s32.totalorder 1, %s18
      %p251 = scmp.lt.s32.totalorder %s18, 3
      %p252 = pnand %p250, %p251
      %p253 = pneg %p252
      // Predicated region
      $region37: #{tpu_custom_call.1} parent=5 // pred_check
        _
      $region38: #{tpu_custom_call.1} parent=5 // pred_check_branch
        %255 = sbr.rel (%p252) target = $region40
      $region39: #{tpu_custom_call.1} parent=5 // pred_region
        %s256 = ssub.s32 %s18, 1
        %s257 = sand.u32 %s45, 1
        %s258 = scalar_lea.sflag [#allocation3], %s257
        %s259 = sand.u32 %s45, 1
        %s260 = smul.addr %s259, 8
        %s261 = scalar_lea.vmem [#allocation2], %s260
        // Predicated region
        $region41: #{tpu_custom_call.1} parent=39 // pred_check
          %p262 = pneg %p58
        $region42: #{tpu_custom_call.1} parent=39 // pred_check_branch
          %264 = sbr.rel (%p262) target = $region44
        $region43: #{tpu_custom_call.1} parent=39 // pred_region
          %265 = dma.done %s258, 128
        $region44: #{tpu_custom_call.1} parent=39 // pred_fallthru
          _
        // Predicated region
        $region45: #{tpu_custom_call.1} parent=39 // pred_check
          %p266 = pneg %p79
        $region46: #{tpu_custom_call.1} parent=39 // pred_check_branch
          %268 = sbr.rel (%p266) target = $region48
        $region47: #{tpu_custom_call.1} parent=39 // pred_region
          %269 = dma.done [#allocation6], 1152
        $region48: #{tpu_custom_call.1} parent=39 // pred_fallthru
          _
        // Predicated region
        $region49: #{tpu_custom_call.1} parent=39 // pred_check
          %p270 = pneg %p126
        $region50: #{tpu_custom_call.1} parent=39 // pred_check_branch
          %272 = sbr.rel (%p270) target = $region52
        $region51: #{tpu_custom_call.1} parent=39 // pred_region
          %273 = dma.done [#allocation6], 1024
        $region52: #{tpu_custom_call.1} parent=39 // pred_fallthru
          _
        %s274 = sand.u32 %s45, 1
        %s275 = scalar_lea.sflag [#allocation3], %s274
        %s276 = sand.u32 %s45, 1
        %s277 = smul.addr %s276, 8
        %s278 = scalar_lea.vmem [#allocation2], %s277
        %p279 = pneg %p58
        %p280 = pneg %p55
        %p281 = pneg %p79
        %p282 = pneg %p76
        %p283 = scmp.lt.s32.totalorder %s27, 1
        %s284 = scalar_select %p283, %s27, 1
        %s285 = scalar_lea.vmem %s2, %s284
        %p286 = pneg %p105
        %p287 = pneg %p102
        %p288 = pneg %p126
        %p289 = pneg %p123
        %p290 = pneg %p147
        %p291 = pneg %p144
        %p292 = pneg %p175
        %p293 = pneg %p172
        %s294 = sand.u32 %s162, 1
        %s295 = scalar_lea.sflag [#allocation4], %s294
        %s296 = sand.u32 %s162, 1
        %s297 = smul.addr %s296, 4
        %s298 = scalar_lea.vmem [#allocation8], %s297
        %p299 = scmp.lt.s32.totalorder %s27, 1
        %s300 = scalar_select %p299, %s27, 1
        %s301 = scalar_lea.vmem %s2, %s300
        %v303 = vld [vmem:[%s261] sm:$0xff]
        %v305 = vcombine.high %v303, %v303
        %v307 = vpack.c.bf16 %v303, %v303
        %v308 = vpack.c.bf16 %v305, %v305
        %v309 = vld [vmem:[#allocation5] sm:$0xf]
        %v310 = vld [vmem:[#allocation5 + $0x4] sm:$0xf]
        %v311 = vld [vmem:[#allocation5 + $0x8] sm:$0xf]
        %v312 = vld [vmem:[#allocation5 + $0xc] sm:$0xf]
        %v313 = vld [vmem:[#allocation5 + $0x10] sm:$0xf]
        %v314 = vld [vmem:[#allocation5 + $0x14] sm:$0xf]
        %v315 = vld [vmem:[#allocation5 + $0x18] sm:$0xf]
        %v316 = vld [vmem:[#allocation5 + $0x1c] sm:$0xf]
        %v317 = vld [vmem:[#allocation5 + $0x20] sm:$0xf]
        %v318 = vld [vmem:[#allocation5 + $0x24] sm:$0xf]
        %v319 = vld [vmem:[#allocation5 + $0x28] sm:$0xf]
        %v320 = vld [vmem:[#allocation5 + $0x2c] sm:$0xf]
        %v321 = vld [vmem:[#allocation5 + $0x30] sm:$0xf]
        %v322 = vld [vmem:[#allocation5 + $0x34] sm:$0xf]
        %v323 = vld [vmem:[#allocation5 + $0x38] sm:$0xf]
        %v324 = vld [vmem:[#allocation5 + $0x3c] sm:$0xf]
        %v325 = vld [vmem:[#allocation5 + $0x40] sm:$0xf]
        %v326 = vld [vmem:[#allocation5 + $0x44] sm:$0xf]
        %v327 = vld [vmem:[%s301] sm:$0x1]
        %v329 = vlaneseq
        %v330 = vshrl.u32 %v329, 7
        %v331 = vsub.s32 0, %v330
        %v332 = vrot.slane %v327, %v331
        %v352 = vunpack.c.l.b16 %v309
        %v353 = vunpack.c.l.b16 %v310
        %v354 = vunpack.c.l.b16 %v311
        %v355 = vunpack.c.l.b16 %v312
        %v356 = vunpack.c.l.b16 %v313
        %v357 = vunpack.c.l.b16 %v314
        %v358 = vunpack.c.l.b16 %v315
        %v359 = vunpack.c.l.b16 %v316
        %v360 = vunpack.c.l.b16 %v317
        %v361 = vunpack.c.l.b16 %v318
        %v362 = vunpack.c.l.b16 %v319
        %v363 = vunpack.c.l.b16 %v320
        %v364 = vunpack.c.l.b16 %v321
        %v365 = vunpack.c.l.b16 %v322
        %v366 = vunpack.c.l.b16 %v323
        %v367 = vunpack.c.l.b16 %v324
        %v368 = vunpack.c.l.b16 %v325
        %v369 = vunpack.c.l.b16 %v326
        %v370 = vpack.c.b16 %v353, %v352
        %v371 = vpack.c.b16 %v355, %v354
        %v372 = vpack.c.b16 %v357, %v356
        %v373 = vpack.c.b16 %v359, %v358
        %v374 = vpack.c.b16 %v361, %v360
        %v375 = vpack.c.b16 %v363, %v362
        %v376 = vpack.c.b16 %v365, %v364
        %v377 = vpack.c.b16 %v367, %v366
        %v378 = vpack.c.b16 %v369, %v368
        %vm388 = vcmask 130048
        %v390 = vsel %vm388, %v308, 0
        %392 = vmatprep.subr.bf16.mxu0 0
        %393 = vmatpush1.bf16.msra.mxu0 %v370
        %394 = vmatprep.subr.bf16.mxu0 0
        %395 = vmatpush1.bf16.msra.mxu0 %v371
        %396 = vmatprep.subr.bf16.mxu0 0
        %397 = vmatpush1.bf16.msra.mxu0 %v372
        %398 = vmatprep.subr.bf16.mxu0 0
        %399 = vmatpush1.bf16.msra.mxu0 %v373
        %400 = vmatprep.subr.bf16.mxu0 0
        %401 = vmatpush1.bf16.msra.mxu0 %v374
        %402 = vmatprep.subr.bf16.mxu0 0
        %403 = vmatpush1.bf16.msra.mxu0 %v375
        %404 = vmatprep.subr.bf16.mxu0 0
        %405 = vmatpush1.bf16.msra.mxu0 %v376
        %406 = vmatprep.subr.bf16.mxu0 0
        %407 = vmatpush1.bf16.msra.mxu0 %v377
        %408 = vmatprep.subr.bf16.mxu0 0
        %409 = vmatpush1.bf16.msra.mxu0 %v378
        %410 = vmatprep.subr.bf16.mxu0 0
        %411 = vmatpush1.bf16.msra.mxu0 0
        %412 = vmatprep.subr.bf16.mxu0 0
        %413 = vmatpush1.bf16.msra.mxu0 0
        %414 = vmatprep.subr.bf16.mxu0 0
        %415 = vmatpush1.bf16.msra.mxu0 0
        %416 = vmatprep.subr.bf16.mxu0 0
        %417 = vmatpush1.bf16.msra.mxu0 0
        %418 = vmatprep.subr.bf16.mxu0 0
        %419 = vmatpush1.bf16.msra.mxu0 0
        %420 = vmatprep.subr.bf16.mxu0 0
        %421 = vmatpush1.bf16.msra.mxu0 0
        %422 = vmatprep.subr.bf16.mxu0 0
        %423 = vmatpush1.bf16.msra.mxu0 0
        %424 = vmatprep.mubr.bf16.mxu0 %v390
        %425 = vmatmul.mubr.bf16.gmra.mrb[0].mxu0 %v307
        %v426 = vpop.f32.mrb[0].mxu0
        %v427 = vadd.f32 %v332, %v426
        %v428 = vpop.f32.mrb[0].mxu0
        %v429 = vpop.f32.mrb[0].mxu0
        %v430 = vpop.f32.mrb[0].mxu0
        %431 = vdwg.mxu0
        %vm432 = vcmp.ge.f32.partialorder %v427, 0.0
        %v433 = vmul.f32 %v427, 0.01
        %v434 = vsel %vm432, %v427, %v433
        %v435 = vpack.c.bf16 %v434, %v434
        %v436 = vld [vmem:[#allocation7] sm:$0xf]
        %v437 = vld [vmem:[#allocation7 + $0x4] sm:$0xf]
        %v438 = vld [vmem:[#allocation7 + $0x8] sm:$0xf]
        %v439 = vld [vmem:[#allocation7 + $0xc] sm:$0xf]
        %v440 = vld [vmem:[#allocation7 + $0x10] sm:$0xf]
        %v441 = vld [vmem:[#allocation7 + $0x14] sm:$0xf]
        %v442 = vld [vmem:[#allocation7 + $0x18] sm:$0xf]
        %v443 = vld [vmem:[#allocation7 + $0x1c] sm:$0xf]
        %v444 = vld [vmem:[#allocation7 + $0x20] sm:$0xf]
        %v445 = vld [vmem:[#allocation7 + $0x24] sm:$0xf]
        %v446 = vld [vmem:[#allocation7 + $0x28] sm:$0xf]
        %v447 = vld [vmem:[#allocation7 + $0x2c] sm:$0xf]
        %v448 = vld [vmem:[#allocation7 + $0x30] sm:$0xf]
        %v449 = vld [vmem:[#allocation7 + $0x34] sm:$0xf]
        %v450 = vld [vmem:[#allocation7 + $0x38] sm:$0xf]
        %v451 = vld [vmem:[#allocation7 + $0x3c] sm:$0xf]
        %v452 = vld [vmem:[%s4] sm:$0x1]
        %v454 = vlaneseq
        %v455 = vshrl.u32 %v454, 7
        %v456 = vsub.s32 0, %v455
        %v457 = vrot.slane %v452, %v456
        %v475 = vunpack.c.l.b16 %v436
        %v476 = vunpack.c.l.b16 %v437
        %v477 = vunpack.c.l.b16 %v438
        %v478 = vunpack.c.l.b16 %v439
        %v479 = vunpack.c.l.b16 %v440
        %v480 = vunpack.c.l.b16 %v441
        %v481 = vunpack.c.l.b16 %v442
        %v482 = vunpack.c.l.b16 %v443
        %v483 = vunpack.c.l.b16 %v444
        %v484 = vunpack.c.l.b16 %v445
        %v485 = vunpack.c.l.b16 %v446
        %v486 = vunpack.c.l.b16 %v447
        %v487 = vunpack.c.l.b16 %v448
        %v488 = vunpack.c.l.b16 %v449
        %v489 = vunpack.c.l.b16 %v450
        %v490 = vunpack.c.l.b16 %v451
        %v491 = vpack.c.b16 %v476, %v475
        %v492 = vpack.c.b16 %v478, %v477
        %v493 = vpack.c.b16 %v480, %v479
        %v494 = vpack.c.b16 %v482, %v481
        %v495 = vpack.c.b16 %v484, %v483
        %v496 = vpack.c.b16 %v486, %v485
        %v497 = vpack.c.b16 %v488, %v487
        %v498 = vpack.c.b16 %v490, %v489
        %507 = vmatprep.subr.bf16.mxu0 0
        %508 = vmatpush1.bf16.msra.mxu0 %v491
        %509 = vmatprep.subr.bf16.mxu0 0
        %510 = vmatpush1.bf16.msra.mxu0 %v492
        %511 = vmatprep.subr.bf16.mxu0 0
        %512 = vmatpush1.bf16.msra.mxu0 %v493
        %513 = vmatprep.subr.bf16.mxu0 0
        %514 = vmatpush1.bf16.msra.mxu0 %v494
        %515 = vmatprep.subr.bf16.mxu0 0
        %516 = vmatpush1.bf16.msra.mxu0 %v495
        %517 = vmatprep.subr.bf16.mxu0 0
        %518 = vmatpush1.bf16.msra.mxu0 %v496
        %519 = vmatprep.subr.bf16.mxu0 0
        %520 = vmatpush1.bf16.msra.mxu0 %v497
        %521 = vmatprep.subr.bf16.mxu0 0
        %522 = vmatpush1.bf16.msra.mxu0 %v498
        %523 = vmatprep.subr.bf16.mxu0 0
        %524 = vmatpush1.bf16.msra.mxu0 0
        %525 = vmatprep.subr.bf16.mxu0 0
        %526 = vmatpush1.bf16.msra.mxu0 0
        %527 = vmatprep.subr.bf16.mxu0 0
        %528 = vmatpush1.bf16.msra.mxu0 0
        %529 = vmatprep.subr.bf16.mxu0 0
        %530 = vmatpush1.bf16.msra.mxu0 0
        %531 = vmatprep.subr.bf16.mxu0 0
        %532 = vmatpush1.bf16.msra.mxu0 0
        %533 = vmatprep.subr.bf16.mxu0 0
        %534 = vmatpush1.bf16.msra.mxu0 0
        %535 = vmatprep.subr.bf16.mxu0 0
        %536 = vmatpush1.bf16.msra.mxu0 0
        %537 = vmatprep.subr.bf16.mxu0 0
        %538 = vmatpush1.bf16.msra.mxu0 0
        %539 = vmatprep.mubr.bf16.mxu0 0
        %540 = vmatmul.mubr.bf16.gmra.mrb[0].mxu0 %v435
        %v541 = vpop.f32.mrb[0].mxu0
        %v542 = vadd.f32 %v457, %v541
        %v543 = vpop.f32.mrb[0].mxu0
        %v544 = vpop.f32.mrb[0].mxu0
        %v545 = vpop.f32.mrb[0].mxu0
        %546 = vdwg.mxu0
        %vm547 = vcmp.ge.f32.partialorder %v542, 0.0
        %v548 = vmul.f32 %v542, 0.01
        %v549 = vsel %vm547, %v542, %v548
        %550 = vst [vmem:[%s298] sm:$0xf] %v549
        %s551 = sand.u32 %s162, 1
        %s552 = scalar_lea.sflag [#allocation4], %s551
        %s553 = sand.u32 %s162, 1
        %s554 = smul.addr %s553, 4
        %s555 = scalar_lea.vmem [#allocation8], %s554
        // Predicated region
        $region53: #{tpu_custom_call.1} parent=39 // pred_check
          %p556 = pneg %p172
        $region54: #{tpu_custom_call.1} parent=39 // pred_check_branch
          %558 = sbr.rel (%p556) target = $region56
        $region55: #{tpu_custom_call.1} parent=39 // pred_region
          %s560 = ssub.s32 64, 64
          %561 = vsyncadd %s552, %s560
          %s562 = sadd.s32 %s28, %s27
          %s563 = smul.addr %s562, 64
          %s564 = scalar_lea.hbm %s5, %s563
          %s566 = sshll.u32 %s555, 4
          %s567 = int_to_ptr.vmem [resolvable:$true] %s566
          %569 = dma.vmem_to_hbm [thread:$0]  %s567, 64, %s564, %s552
        $region56: #{tpu_custom_call.1} parent=39 // pred_fallthru
          _
      $region40: #{tpu_custom_call.1} parent=5 // pred_fallthru
        _
      %p570 = scmp.le.s32.totalorder 2, %s18
      // Predicated region
      $region57: #{tpu_custom_call.1} parent=5 // pred_check
        %p571 = pneg %p570
      $region58: #{tpu_custom_call.1} parent=5 // pred_check_branch
        %573 = sbr.rel (%p571) target = $region60
      $region59: #{tpu_custom_call.1} parent=5 // pred_region
        %s574 = ssub.s32 %s18, 2
        // Predicated region
        $region61: #{tpu_custom_call.1} parent=59 // pred_check
          %p575 = pneg %p178
        $region62: #{tpu_custom_call.1} parent=59 // pred_check_branch
          %577 = sbr.rel (%p575) target = $region64
        $region63: #{tpu_custom_call.1} parent=59 // pred_region
          %s578 = sand.u32 %s163, 1
          %s579 = scalar_lea.sflag [#allocation4], %s578
          %s580 = sand.u32 %s163, 1
          %s581 = smul.addr %s580, 4
          %s582 = scalar_lea.vmem [#allocation8], %s581
          %583 = dma.done %s579, 64
        $region64: #{tpu_custom_call.1} parent=59 // pred_fallthru
          _
      $region60: #{tpu_custom_call.1} parent=5 // pred_fallthru
        _
    $region6: #{tpu_custom_call.1} parent=1 // loop_footer
      %s22 = sadd.s32 1, %s18
    $region7: #{tpu_custom_call.1} parent=1 // loop_footer_branch
      %17 = sbr.rel target = $region3
    $region8: #{tpu_custom_call.1} parent=1 // loop_exit
      _
    %584 = vsyncpa [#allocation3], 1
    %s585 = scalar_lea.sflag [#allocation3], 1
    %586 = vsyncpa %s585, 1
    %587 = vsyncpa [#allocation6], 1
    %588 = vsyncpa [#allocation4], 1
    %s589 = scalar_lea.sflag [#allocation4], 1
    %590 = vsyncpa %s589, 1

</llo_original>
